<compile_context>
chip_gen: v7x
topology: tpu7x:2x2x1
jax: 0.10.0
libtpu: 0.0.40
codegen_flags: <defaults>
</compile_context>

<pallas_src>
import functools

import jax
import jax.numpy as jnp
from jax.experimental import pallas as pl
from jax.experimental.pallas import tpu as pltpu


_DIMS = (8, 6, 4, 1)  # layer widths: 8 -> 6 -> 4 -> 1


def _mlp_kernel(x_ref, w1_ref, b1_ref, w2_ref, b2_ref, w3_ref, b3_ref, o_ref):
    """x_ref: (8, TB) VMEM tile of x^T. w*/b*: SMEM scalars. o_ref: (1, TB)."""
    x = x_ref[...]  # (8, TB) f32, batch on lanes

    def layer(rows, w_ref, b_ref, n_in, n_out):
        outs = []
        for j in range(n_out):
            acc = w_ref[0, j] * rows[0]            # scalar * (1, TB) broadcast FMA
            for k in range(1, n_in):
                acc = acc + w_ref[k, j] * rows[k]
            outs.append(jax.nn.sigmoid(acc + b_ref[j]))   # exp/recip on EUP slot
        return outs

    rows = [x[k:k + 1, :] for k in range(_DIMS[0])]        # 8 x (1, TB)
    h1 = layer(rows, w1_ref, b1_ref, _DIMS[0], _DIMS[1])   # 6 x (1, TB)
    h2 = layer(h1, w2_ref, b2_ref, _DIMS[1], _DIMS[2])     # 4 x (1, TB)
    h3 = layer(h2, w3_ref, b3_ref, _DIMS[2], _DIMS[3])     # 1 x (1, TB)
    o_ref[...] = h3[0]                                     # lane-dense (1, TB) store


@functools.partial(jax.jit, static_argnames=("tile_b",))
def mlp_forward(x, params, *, tile_b=1024):
    w1, b1, w2, b2, w3, b3 = params
    B, F = x.shape
    assert F == _DIMS[0]

    # Pad batch up to a lane-aligned (multiple of 128) multiple of the batch tile.
    b_padded = pl.cdiv(max(B, 128), 128) * 128
    tb = min(tile_b, b_padded)
    b_padded = pl.cdiv(b_padded, tb) * tb

    # Transposed, batch-on-lanes input; padding lanes are zero and discarded later.
    xt = jnp.pad(x.T.astype(jnp.float32), ((0, 0), (0, b_padded - B)))

    smem = pl.BlockSpec(memory_space=pltpu.MemorySpace.SMEM)
    out_t = pl.pallas_call(
        _mlp_kernel,
        out_shape=jax.ShapeDtypeStruct((1, b_padded), jnp.float32),
        grid=(b_padded // tb,),
        in_specs=[
            pl.BlockSpec((_DIMS[0], tb), lambda i: (0, i)),  # x^T batch tiles
            smem, smem, smem, smem, smem, smem,              # weights/biases in SMEM
        ],
        out_specs=pl.BlockSpec((1, tb), lambda i: (0, i)),
        compiler_params=pltpu.CompilerParams(
            dimension_semantics=("parallel",),  # v7x: shard batch over 2 TCs
        ),
    )(xt, w1, b1, w2, b2, w3, b3)

    return out_t[0, :B].reshape(B, 1)


def init_params(key):
    # Deterministic init mimicking PyTorch nn.Linear default:
    # U(-1/sqrt(fan_in), 1/sqrt(fan_in)) for both weight and bias.
    params = []
    for fan_in, fan_out in zip(_DIMS[:-1], _DIMS[1:]):
        key, kw, kb = jax.random.split(key, 3)
        bound = 1.0 / jnp.sqrt(float(fan_in))
        w = jax.random.uniform(kw, (fan_in, fan_out), jnp.float32, -bound, bound)
        b = jax.random.uniform(kb, (fan_out,), jnp.float32, -bound, bound)
        params += [w, b]
    return tuple(params)


def _reference(x, params):
    w1, b1, w2, b2, w3, b3 = params
    h = jax.nn.sigmoid(x @ w1 + b1)
    h = jax.nn.sigmoid(h @ w2 + b2)
    return jax.nn.sigmoid(h @ w3 + b3)


if __name__ == "__main__":
    key = jax.random.PRNGKey(0)
    key, kx1, kx2 = jax.random.split(key, 3)
    params = init_params(key)

    # Small batch (matches the module's toy usage) ...
    x_small = jax.random.normal(kx1, (8, 8), jnp.float32)
    out_small = jax.block_until_ready(mlp_forward(x_small, params))
    ref_small = _reference(x_small, params)
    assert out_small.shape == (8, 1)
    assert jnp.allclose(out_small, ref_small, atol=1e-5, rtol=1e-5)

    # ... and a non-multiple-of-128 batch to exercise padding + lane tiling.
    x_big = jax.random.normal(kx2, (300, 8), jnp.float32)
    out_big = jax.block_until_ready(mlp_forward(x_big, params))
    ref_big = _reference(x_big, params)
    assert out_big.shape == (300, 1)
    assert jnp.allclose(out_big, ref_big, atol=1e-5, rtol=1e-5)

    print("KERNEL_OK")
</pallas_src>

<mosaic_0001>
module attributes {stable_mosaic.version = 11 : i64} {
  func.func @_mlp_kernel(%arg0: i32, %arg1: memref<8x128xf32, #tpu.memory_space<vmem>>, %arg2: memref<8x6xf32, #tpu.memory_space<smem>>, %arg3: memref<6xf32, #tpu.memory_space<smem>>, %arg4: memref<6x4xf32, #tpu.memory_space<smem>>, %arg5: memref<4xf32, #tpu.memory_space<smem>>, %arg6: memref<4x1xf32, #tpu.memory_space<smem>>, %arg7: memref<1xf32, #tpu.memory_space<smem>>, %arg8: memref<1x128xf32, #tpu.memory_space<vmem>>) attributes {dimension_semantics = [#tpu.dimension_semantics<parallel>], iteration_bounds = array<i64: 1>, scalar_prefetch = 0 : i64, scratch_operands = 0 : i64, tpu.core_type = #tpu.core_type<tc>, window_params = [{transform_indices = @transform_0, window_bounds = array<i64: 8, 128>}, {transform_indices = @transform_1, window_bounds = array<i64: 8, 6>}, {transform_indices = @transform_2, window_bounds = array<i64: 6>}, {transform_indices = @transform_3, window_bounds = array<i64: 6, 4>}, {transform_indices = @transform_4, window_bounds = array<i64: 4>}, {transform_indices = @transform_5, window_bounds = array<i64: 4, 1>}, {transform_indices = @transform_6, window_bounds = array<i64: 1>}, {transform_indices = @transform_7, window_bounds = array<i64: 1, 128>}]} {
    %c0 = arith.constant 0 : index
    %c0_0 = arith.constant 0 : index
    %0 = vector.load %arg1[%c0, %c0_0] : memref<8x128xf32, #tpu.memory_space<vmem>>, vector<8x128xf32>
    %1 = vector.extract_strided_slice %0 {offsets = [0, 0], sizes = [1, 128], strides = [1, 1]} : vector<8x128xf32> to vector<1x128xf32>
    %2 = vector.extract_strided_slice %0 {offsets = [1, 0], sizes = [1, 128], strides = [1, 1]} : vector<8x128xf32> to vector<1x128xf32>
    %3 = vector.extract_strided_slice %0 {offsets = [2, 0], sizes = [1, 128], strides = [1, 1]} : vector<8x128xf32> to vector<1x128xf32>
    %4 = vector.extract_strided_slice %0 {offsets = [3, 0], sizes = [1, 128], strides = [1, 1]} : vector<8x128xf32> to vector<1x128xf32>
    %5 = vector.extract_strided_slice %0 {offsets = [4, 0], sizes = [1, 128], strides = [1, 1]} : vector<8x128xf32> to vector<1x128xf32>
    %6 = vector.extract_strided_slice %0 {offsets = [5, 0], sizes = [1, 128], strides = [1, 1]} : vector<8x128xf32> to vector<1x128xf32>
    %7 = vector.extract_strided_slice %0 {offsets = [6, 0], sizes = [1, 128], strides = [1, 1]} : vector<8x128xf32> to vector<1x128xf32>
    %8 = vector.extract_strided_slice %0 {offsets = [7, 0], sizes = [1, 128], strides = [1, 1]} : vector<8x128xf32> to vector<1x128xf32>
    %c0_1 = arith.constant 0 : index
    %c0_2 = arith.constant 0 : index
    %9 = memref.load %arg2[%c0_1, %c0_2] : memref<8x6xf32, #tpu.memory_space<smem>>
    %10 = vector.broadcast %9 : f32 to vector<1x128xf32>
    %11 = arith.mulf %10, %1 : vector<1x128xf32>
    %c1 = arith.constant 1 : index
    %c0_3 = arith.constant 0 : index
    %12 = memref.load %arg2[%c1, %c0_3] : memref<8x6xf32, #tpu.memory_space<smem>>
    %13 = vector.broadcast %12 : f32 to vector<1x128xf32>
    %14 = arith.mulf %13, %2 : vector<1x128xf32>
    %15 = arith.addf %11, %14 : vector<1x128xf32>
    %c2 = arith.constant 2 : index
    %c0_4 = arith.constant 0 : index
    %16 = memref.load %arg2[%c2, %c0_4] : memref<8x6xf32, #tpu.memory_space<smem>>
    %17 = vector.broadcast %16 : f32 to vector<1x128xf32>
    %18 = arith.mulf %17, %3 : vector<1x128xf32>
    %19 = arith.addf %15, %18 : vector<1x128xf32>
    %c3 = arith.constant 3 : index
    %c0_5 = arith.constant 0 : index
    %20 = memref.load %arg2[%c3, %c0_5] : memref<8x6xf32, #tpu.memory_space<smem>>
    %21 = vector.broadcast %20 : f32 to vector<1x128xf32>
    %22 = arith.mulf %21, %4 : vector<1x128xf32>
    %23 = arith.addf %19, %22 : vector<1x128xf32>
    %c4 = arith.constant 4 : index
    %c0_6 = arith.constant 0 : index
    %24 = memref.load %arg2[%c4, %c0_6] : memref<8x6xf32, #tpu.memory_space<smem>>
    %25 = vector.broadcast %24 : f32 to vector<1x128xf32>
    %26 = arith.mulf %25, %5 : vector<1x128xf32>
    %27 = arith.addf %23, %26 : vector<1x128xf32>
    %c5 = arith.constant 5 : index
    %c0_7 = arith.constant 0 : index
    %28 = memref.load %arg2[%c5, %c0_7] : memref<8x6xf32, #tpu.memory_space<smem>>
    %29 = vector.broadcast %28 : f32 to vector<1x128xf32>
    %30 = arith.mulf %29, %6 : vector<1x128xf32>
    %31 = arith.addf %27, %30 : vector<1x128xf32>
    %c6 = arith.constant 6 : index
    %c0_8 = arith.constant 0 : index
    %32 = memref.load %arg2[%c6, %c0_8] : memref<8x6xf32, #tpu.memory_space<smem>>
    %33 = vector.broadcast %32 : f32 to vector<1x128xf32>
    %34 = arith.mulf %33, %7 : vector<1x128xf32>
    %35 = arith.addf %31, %34 : vector<1x128xf32>
    %c7 = arith.constant 7 : index
    %c0_9 = arith.constant 0 : index
    %36 = memref.load %arg2[%c7, %c0_9] : memref<8x6xf32, #tpu.memory_space<smem>>
    %37 = vector.broadcast %36 : f32 to vector<1x128xf32>
    %38 = arith.mulf %37, %8 : vector<1x128xf32>
    %39 = arith.addf %35, %38 : vector<1x128xf32>
    %c0_10 = arith.constant 0 : index
    %40 = memref.load %arg3[%c0_10] : memref<6xf32, #tpu.memory_space<smem>>
    %41 = vector.broadcast %40 : f32 to vector<1x128xf32>
    %42 = arith.addf %39, %41 : vector<1x128xf32>
    %43 = arith.negf %42 : vector<1x128xf32>
    %44 = math.exp %43 : vector<1x128xf32>
    %cst = arith.constant 1.000000e+00 : f32
    %45 = vector.broadcast %cst : f32 to vector<1x128xf32>
    %46 = arith.addf %45, %44 : vector<1x128xf32>
    %47 = arith.divf %45, %46 : vector<1x128xf32>
    %c0_11 = arith.constant 0 : index
    %c1_12 = arith.constant 1 : index
    %48 = memref.load %arg2[%c0_11, %c1_12] : memref<8x6xf32, #tpu.memory_space<smem>>
    %49 = vector.broadcast %48 : f32 to vector<1x128xf32>
    %50 = arith.mulf %49, %1 : vector<1x128xf32>
    %c1_13 = arith.constant 1 : index
    %c1_14 = arith.constant 1 : index
    %51 = memref.load %arg2[%c1_13, %c1_14] : memref<8x6xf32, #tpu.memory_space<smem>>
    %52 = vector.broadcast %51 : f32 to vector<1x128xf32>
    %53 = arith.mulf %52, %2 : vector<1x128xf32>
    %54 = arith.addf %50, %53 : vector<1x128xf32>
    %c2_15 = arith.constant 2 : index
    %c1_16 = arith.constant 1 : index
    %55 = memref.load %arg2[%c2_15, %c1_16] : memref<8x6xf32, #tpu.memory_space<smem>>
    %56 = vector.broadcast %55 : f32 to vector<1x128xf32>
    %57 = arith.mulf %56, %3 : vector<1x128xf32>
    %58 = arith.addf %54, %57 : vector<1x128xf32>
    %c3_17 = arith.constant 3 : index
    %c1_18 = arith.constant 1 : index
    %59 = memref.load %arg2[%c3_17, %c1_18] : memref<8x6xf32, #tpu.memory_space<smem>>
    %60 = vector.broadcast %59 : f32 to vector<1x128xf32>
    %61 = arith.mulf %60, %4 : vector<1x128xf32>
    %62 = arith.addf %58, %61 : vector<1x128xf32>
    %c4_19 = arith.constant 4 : index
    %c1_20 = arith.constant 1 : index
    %63 = memref.load %arg2[%c4_19, %c1_20] : memref<8x6xf32, #tpu.memory_space<smem>>
    %64 = vector.broadcast %63 : f32 to vector<1x128xf32>
    %65 = arith.mulf %64, %5 : vector<1x128xf32>
    %66 = arith.addf %62, %65 : vector<1x128xf32>
    %c5_21 = arith.constant 5 : index
    %c1_22 = arith.constant 1 : index
    %67 = memref.load %arg2[%c5_21, %c1_22] : memref<8x6xf32, #tpu.memory_space<smem>>
    %68 = vector.broadcast %67 : f32 to vector<1x128xf32>
    %69 = arith.mulf %68, %6 : vector<1x128xf32>
    %70 = arith.addf %66, %69 : vector<1x128xf32>
    %c6_23 = arith.constant 6 : index
    %c1_24 = arith.constant 1 : index
    %71 = memref.load %arg2[%c6_23, %c1_24] : memref<8x6xf32, #tpu.memory_space<smem>>
    %72 = vector.broadcast %71 : f32 to vector<1x128xf32>
    %73 = arith.mulf %72, %7 : vector<1x128xf32>
    %74 = arith.addf %70, %73 : vector<1x128xf32>
    %c7_25 = arith.constant 7 : index
    %c1_26 = arith.constant 1 : index
    %75 = memref.load %arg2[%c7_25, %c1_26] : memref<8x6xf32, #tpu.memory_space<smem>>
    %76 = vector.broadcast %75 : f32 to vector<1x128xf32>
    %77 = arith.mulf %76, %8 : vector<1x128xf32>
    %78 = arith.addf %74, %77 : vector<1x128xf32>
    %c1_27 = arith.constant 1 : index
    %79 = memref.load %arg3[%c1_27] : memref<6xf32, #tpu.memory_space<smem>>
    %80 = vector.broadcast %79 : f32 to vector<1x128xf32>
    %81 = arith.addf %78, %80 : vector<1x128xf32>
    %82 = arith.negf %81 : vector<1x128xf32>
    %83 = math.exp %82 : vector<1x128xf32>
    %cst_28 = arith.constant 1.000000e+00 : f32
    %84 = vector.broadcast %cst_28 : f32 to vector<1x128xf32>
    %85 = arith.addf %84, %83 : vector<1x128xf32>
    %86 = arith.divf %84, %85 : vector<1x128xf32>
    %c0_29 = arith.constant 0 : index
    %c2_30 = arith.constant 2 : index
    %87 = memref.load %arg2[%c0_29, %c2_30] : memref<8x6xf32, #tpu.memory_space<smem>>
    %88 = vector.broadcast %87 : f32 to vector<1x128xf32>
    %89 = arith.mulf %88, %1 : vector<1x128xf32>
    %c1_31 = arith.constant 1 : index
    %c2_32 = arith.constant 2 : index
    %90 = memref.load %arg2[%c1_31, %c2_32] : memref<8x6xf32, #tpu.memory_space<smem>>
    %91 = vector.broadcast %90 : f32 to vector<1x128xf32>
    %92 = arith.mulf %91, %2 : vector<1x128xf32>
    %93 = arith.addf %89, %92 : vector<1x128xf32>
    %c2_33 = arith.constant 2 : index
    %c2_34 = arith.constant 2 : index
    %94 = memref.load %arg2[%c2_33, %c2_34] : memref<8x6xf32, #tpu.memory_space<smem>>
    %95 = vector.broadcast %94 : f32 to vector<1x128xf32>
    %96 = arith.mulf %95, %3 : vector<1x128xf32>
    %97 = arith.addf %93, %96 : vector<1x128xf32>
    %c3_35 = arith.constant 3 : index
    %c2_36 = arith.constant 2 : index
    %98 = memref.load %arg2[%c3_35, %c2_36] : memref<8x6xf32, #tpu.memory_space<smem>>
    %99 = vector.broadcast %98 : f32 to vector<1x128xf32>
    %100 = arith.mulf %99, %4 : vector<1x128xf32>
    %101 = arith.addf %97, %100 : vector<1x128xf32>
    %c4_37 = arith.constant 4 : index
    %c2_38 = arith.constant 2 : index
    %102 = memref.load %arg2[%c4_37, %c2_38] : memref<8x6xf32, #tpu.memory_space<smem>>
    %103 = vector.broadcast %102 : f32 to vector<1x128xf32>
    %104 = arith.mulf %103, %5 : vector<1x128xf32>
    %105 = arith.addf %101, %104 : vector<1x128xf32>
    %c5_39 = arith.constant 5 : index
    %c2_40 = arith.constant 2 : index
    %106 = memref.load %arg2[%c5_39, %c2_40] : memref<8x6xf32, #tpu.memory_space<smem>>
    %107 = vector.broadcast %106 : f32 to vector<1x128xf32>
    %108 = arith.mulf %107, %6 : vector<1x128xf32>
    %109 = arith.addf %105, %108 : vector<1x128xf32>
    %c6_41 = arith.constant 6 : index
    %c2_42 = arith.constant 2 : index
    %110 = memref.load %arg2[%c6_41, %c2_42] : memref<8x6xf32, #tpu.memory_space<smem>>
    %111 = vector.broadcast %110 : f32 to vector<1x128xf32>
    %112 = arith.mulf %111, %7 : vector<1x128xf32>
    %113 = arith.addf %109, %112 : vector<1x128xf32>
    %c7_43 = arith.constant 7 : index
    %c2_44 = arith.constant 2 : index
    %114 = memref.load %arg2[%c7_43, %c2_44] : memref<8x6xf32, #tpu.memory_space<smem>>
    %115 = vector.broadcast %114 : f32 to vector<1x128xf32>
    %116 = arith.mulf %115, %8 : vector<1x128xf32>
    %117 = arith.addf %113, %116 : vector<1x128xf32>
    %c2_45 = arith.constant 2 : index
    %118 = memref.load %arg3[%c2_45] : memref<6xf32, #tpu.memory_space<smem>>
    %119 = vector.broadcast %118 : f32 to vector<1x128xf32>
    %120 = arith.addf %117, %119 : vector<1x128xf32>
    %121 = arith.negf %120 : vector<1x128xf32>
    %122 = math.exp %121 : vector<1x128xf32>
    %cst_46 = arith.constant 1.000000e+00 : f32
    %123 = vector.broadcast %cst_46 : f32 to vector<1x128xf32>
    %124 = arith.addf %123, %122 : vector<1x128xf32>
    %125 = arith.divf %123, %124 : vector<1x128xf32>
    %c0_47 = arith.constant 0 : index
    %c3_48 = arith.constant 3 : index
    %126 = memref.load %arg2[%c0_47, %c3_48] : memref<8x6xf32, #tpu.memory_space<smem>>
    %127 = vector.broadcast %126 : f32 to vector<1x128xf32>
    %128 = arith.mulf %127, %1 : vector<1x128xf32>
    %c1_49 = arith.constant 1 : index
    %c3_50 = arith.constant 3 : index
    %129 = memref.load %arg2[%c1_49, %c3_50] : memref<8x6xf32, #tpu.memory_space<smem>>
    %130 = vector.broadcast %129 : f32 to vector<1x128xf32>
    %131 = arith.mulf %130, %2 : vector<1x128xf32>
    %132 = arith.addf %128, %131 : vector<1x128xf32>
    %c2_51 = arith.constant 2 : index
    %c3_52 = arith.constant 3 : index
    %133 = memref.load %arg2[%c2_51, %c3_52] : memref<8x6xf32, #tpu.memory_space<smem>>
    %134 = vector.broadcast %133 : f32 to vector<1x128xf32>
    %135 = arith.mulf %134, %3 : vector<1x128xf32>
    %136 = arith.addf %132, %135 : vector<1x128xf32>
    %c3_53 = arith.constant 3 : index
    %c3_54 = arith.constant 3 : index
    %137 = memref.load %arg2[%c3_53, %c3_54] : memref<8x6xf32, #tpu.memory_space<smem>>
    %138 = vector.broadcast %137 : f32 to vector<1x128xf32>
    %139 = arith.mulf %138, %4 : vector<1x128xf32>
    %140 = arith.addf %136, %139 : vector<1x128xf32>
    %c4_55 = arith.constant 4 : index
    %c3_56 = arith.constant 3 : index
    %141 = memref.load %arg2[%c4_55, %c3_56] : memref<8x6xf32, #tpu.memory_space<smem>>
    %142 = vector.broadcast %141 : f32 to vector<1x128xf32>
    %143 = arith.mulf %142, %5 : vector<1x128xf32>
    %144 = arith.addf %140, %143 : vector<1x128xf32>
    %c5_57 = arith.constant 5 : index
    %c3_58 = arith.constant 3 : index
    %145 = memref.load %arg2[%c5_57, %c3_58] : memref<8x6xf32, #tpu.memory_space<smem>>
    %146 = vector.broadcast %145 : f32 to vector<1x128xf32>
    %147 = arith.mulf %146, %6 : vector<1x128xf32>
    %148 = arith.addf %144, %147 : vector<1x128xf32>
    %c6_59 = arith.constant 6 : index
    %c3_60 = arith.constant 3 : index
    %149 = memref.load %arg2[%c6_59, %c3_60] : memref<8x6xf32, #tpu.memory_space<smem>>
    %150 = vector.broadcast %149 : f32 to vector<1x128xf32>
    %151 = arith.mulf %150, %7 : vector<1x128xf32>
    %152 = arith.addf %148, %151 : vector<1x128xf32>
    %c7_61 = arith.constant 7 : index
    %c3_62 = arith.constant 3 : index
    %153 = memref.load %arg2[%c7_61, %c3_62] : memref<8x6xf32, #tpu.memory_space<smem>>
    %154 = vector.broadcast %153 : f32 to vector<1x128xf32>
    %155 = arith.mulf %154, %8 : vector<1x128xf32>
    %156 = arith.addf %152, %155 : vector<1x128xf32>
    %c3_63 = arith.constant 3 : index
    %157 = memref.load %arg3[%c3_63] : memref<6xf32, #tpu.memory_space<smem>>
    %158 = vector.broadcast %157 : f32 to vector<1x128xf32>
    %159 = arith.addf %156, %158 : vector<1x128xf32>
    %160 = arith.negf %159 : vector<1x128xf32>
    %161 = math.exp %160 : vector<1x128xf32>
    %cst_64 = arith.constant 1.000000e+00 : f32
    %162 = vector.broadcast %cst_64 : f32 to vector<1x128xf32>
    %163 = arith.addf %162, %161 : vector<1x128xf32>
    %164 = arith.divf %162, %163 : vector<1x128xf32>
    %c0_65 = arith.constant 0 : index
    %c4_66 = arith.constant 4 : index
    %165 = memref.load %arg2[%c0_65, %c4_66] : memref<8x6xf32, #tpu.memory_space<smem>>
    %166 = vector.broadcast %165 : f32 to vector<1x128xf32>
    %167 = arith.mulf %166, %1 : vector<1x128xf32>
    %c1_67 = arith.constant 1 : index
    %c4_68 = arith.constant 4 : index
    %168 = memref.load %arg2[%c1_67, %c4_68] : memref<8x6xf32, #tpu.memory_space<smem>>
    %169 = vector.broadcast %168 : f32 to vector<1x128xf32>
    %170 = arith.mulf %169, %2 : vector<1x128xf32>
    %171 = arith.addf %167, %170 : vector<1x128xf32>
    %c2_69 = arith.constant 2 : index
    %c4_70 = arith.constant 4 : index
    %172 = memref.load %arg2[%c2_69, %c4_70] : memref<8x6xf32, #tpu.memory_space<smem>>
    %173 = vector.broadcast %172 : f32 to vector<1x128xf32>
    %174 = arith.mulf %173, %3 : vector<1x128xf32>
    %175 = arith.addf %171, %174 : vector<1x128xf32>
    %c3_71 = arith.constant 3 : index
    %c4_72 = arith.constant 4 : index
    %176 = memref.load %arg2[%c3_71, %c4_72] : memref<8x6xf32, #tpu.memory_space<smem>>
    %177 = vector.broadcast %176 : f32 to vector<1x128xf32>
    %178 = arith.mulf %177, %4 : vector<1x128xf32>
    %179 = arith.addf %175, %178 : vector<1x128xf32>
    %c4_73 = arith.constant 4 : index
    %c4_74 = arith.constant 4 : index
    %180 = memref.load %arg2[%c4_73, %c4_74] : memref<8x6xf32, #tpu.memory_space<smem>>
    %181 = vector.broadcast %180 : f32 to vector<1x128xf32>
    %182 = arith.mulf %181, %5 : vector<1x128xf32>
    %183 = arith.addf %179, %182 : vector<1x128xf32>
    %c5_75 = arith.constant 5 : index
    %c4_76 = arith.constant 4 : index
    %184 = memref.load %arg2[%c5_75, %c4_76] : memref<8x6xf32, #tpu.memory_space<smem>>
    %185 = vector.broadcast %184 : f32 to vector<1x128xf32>
    %186 = arith.mulf %185, %6 : vector<1x128xf32>
    %187 = arith.addf %183, %186 : vector<1x128xf32>
    %c6_77 = arith.constant 6 : index
    %c4_78 = arith.constant 4 : index
    %188 = memref.load %arg2[%c6_77, %c4_78] : memref<8x6xf32, #tpu.memory_space<smem>>
    %189 = vector.broadcast %188 : f32 to vector<1x128xf32>
    %190 = arith.mulf %189, %7 : vector<1x128xf32>
    %191 = arith.addf %187, %190 : vector<1x128xf32>
    %c7_79 = arith.constant 7 : index
    %c4_80 = arith.constant 4 : index
    %192 = memref.load %arg2[%c7_79, %c4_80] : memref<8x6xf32, #tpu.memory_space<smem>>
    %193 = vector.broadcast %192 : f32 to vector<1x128xf32>
    %194 = arith.mulf %193, %8 : vector<1x128xf32>
    %195 = arith.addf %191, %194 : vector<1x128xf32>
    %c4_81 = arith.constant 4 : index
    %196 = memref.load %arg3[%c4_81] : memref<6xf32, #tpu.memory_space<smem>>
    %197 = vector.broadcast %196 : f32 to vector<1x128xf32>
    %198 = arith.addf %195, %197 : vector<1x128xf32>
    %199 = arith.negf %198 : vector<1x128xf32>
    %200 = math.exp %199 : vector<1x128xf32>
    %cst_82 = arith.constant 1.000000e+00 : f32
    %201 = vector.broadcast %cst_82 : f32 to vector<1x128xf32>
    %202 = arith.addf %201, %200 : vector<1x128xf32>
    %203 = arith.divf %201, %202 : vector<1x128xf32>
    %c0_83 = arith.constant 0 : index
    %c5_84 = arith.constant 5 : index
    %204 = memref.load %arg2[%c0_83, %c5_84] : memref<8x6xf32, #tpu.memory_space<smem>>
    %205 = vector.broadcast %204 : f32 to vector<1x128xf32>
    %206 = arith.mulf %205, %1 : vector<1x128xf32>
    %c1_85 = arith.constant 1 : index
    %c5_86 = arith.constant 5 : index
    %207 = memref.load %arg2[%c1_85, %c5_86] : memref<8x6xf32, #tpu.memory_space<smem>>
    %208 = vector.broadcast %207 : f32 to vector<1x128xf32>
    %209 = arith.mulf %208, %2 : vector<1x128xf32>
    %210 = arith.addf %206, %209 : vector<1x128xf32>
    %c2_87 = arith.constant 2 : index
    %c5_88 = arith.constant 5 : index
    %211 = memref.load %arg2[%c2_87, %c5_88] : memref<8x6xf32, #tpu.memory_space<smem>>
    %212 = vector.broadcast %211 : f32 to vector<1x128xf32>
    %213 = arith.mulf %212, %3 : vector<1x128xf32>
    %214 = arith.addf %210, %213 : vector<1x128xf32>
    %c3_89 = arith.constant 3 : index
    %c5_90 = arith.constant 5 : index
    %215 = memref.load %arg2[%c3_89, %c5_90] : memref<8x6xf32, #tpu.memory_space<smem>>
    %216 = vector.broadcast %215 : f32 to vector<1x128xf32>
    %217 = arith.mulf %216, %4 : vector<1x128xf32>
    %218 = arith.addf %214, %217 : vector<1x128xf32>
    %c4_91 = arith.constant 4 : index
    %c5_92 = arith.constant 5 : index
    %219 = memref.load %arg2[%c4_91, %c5_92] : memref<8x6xf32, #tpu.memory_space<smem>>
    %220 = vector.broadcast %219 : f32 to vector<1x128xf32>
    %221 = arith.mulf %220, %5 : vector<1x128xf32>
    %222 = arith.addf %218, %221 : vector<1x128xf32>
    %c5_93 = arith.constant 5 : index
    %c5_94 = arith.constant 5 : index
    %223 = memref.load %arg2[%c5_93, %c5_94] : memref<8x6xf32, #tpu.memory_space<smem>>
    %224 = vector.broadcast %223 : f32 to vector<1x128xf32>
    %225 = arith.mulf %224, %6 : vector<1x128xf32>
    %226 = arith.addf %222, %225 : vector<1x128xf32>
    %c6_95 = arith.constant 6 : index
    %c5_96 = arith.constant 5 : index
    %227 = memref.load %arg2[%c6_95, %c5_96] : memref<8x6xf32, #tpu.memory_space<smem>>
    %228 = vector.broadcast %227 : f32 to vector<1x128xf32>
    %229 = arith.mulf %228, %7 : vector<1x128xf32>
    %230 = arith.addf %226, %229 : vector<1x128xf32>
    %c7_97 = arith.constant 7 : index
    %c5_98 = arith.constant 5 : index
    %231 = memref.load %arg2[%c7_97, %c5_98] : memref<8x6xf32, #tpu.memory_space<smem>>
    %232 = vector.broadcast %231 : f32 to vector<1x128xf32>
    %233 = arith.mulf %232, %8 : vector<1x128xf32>
    %234 = arith.addf %230, %233 : vector<1x128xf32>
    %c5_99 = arith.constant 5 : index
    %235 = memref.load %arg3[%c5_99] : memref<6xf32, #tpu.memory_space<smem>>
    %236 = vector.broadcast %235 : f32 to vector<1x128xf32>
    %237 = arith.addf %234, %236 : vector<1x128xf32>
    %238 = arith.negf %237 : vector<1x128xf32>
    %239 = math.exp %238 : vector<1x128xf32>
    %cst_100 = arith.constant 1.000000e+00 : f32
    %240 = vector.broadcast %cst_100 : f32 to vector<1x128xf32>
    %241 = arith.addf %240, %239 : vector<1x128xf32>
    %242 = arith.divf %240, %241 : vector<1x128xf32>
    %c0_101 = arith.constant 0 : index
    %c0_102 = arith.constant 0 : index
    %243 = memref.load %arg4[%c0_101, %c0_102] : memref<6x4xf32, #tpu.memory_space<smem>>
    %244 = vector.broadcast %243 : f32 to vector<1x128xf32>
    %245 = arith.mulf %244, %47 : vector<1x128xf32>
    %c1_103 = arith.constant 1 : index
    %c0_104 = arith.constant 0 : index
    %246 = memref.load %arg4[%c1_103, %c0_104] : memref<6x4xf32, #tpu.memory_space<smem>>
    %247 = vector.broadcast %246 : f32 to vector<1x128xf32>
    %248 = arith.mulf %247, %86 : vector<1x128xf32>
    %249 = arith.addf %245, %248 : vector<1x128xf32>
    %c2_105 = arith.constant 2 : index
    %c0_106 = arith.constant 0 : index
    %250 = memref.load %arg4[%c2_105, %c0_106] : memref<6x4xf32, #tpu.memory_space<smem>>
    %251 = vector.broadcast %250 : f32 to vector<1x128xf32>
    %252 = arith.mulf %251, %125 : vector<1x128xf32>
    %253 = arith.addf %249, %252 : vector<1x128xf32>
    %c3_107 = arith.constant 3 : index
    %c0_108 = arith.constant 0 : index
    %254 = memref.load %arg4[%c3_107, %c0_108] : memref<6x4xf32, #tpu.memory_space<smem>>
    %255 = vector.broadcast %254 : f32 to vector<1x128xf32>
    %256 = arith.mulf %255, %164 : vector<1x128xf32>
    %257 = arith.addf %253, %256 : vector<1x128xf32>
    %c4_109 = arith.constant 4 : index
    %c0_110 = arith.constant 0 : index
    %258 = memref.load %arg4[%c4_109, %c0_110] : memref<6x4xf32, #tpu.memory_space<smem>>
    %259 = vector.broadcast %258 : f32 to vector<1x128xf32>
    %260 = arith.mulf %259, %203 : vector<1x128xf32>
    %261 = arith.addf %257, %260 : vector<1x128xf32>
    %c5_111 = arith.constant 5 : index
    %c0_112 = arith.constant 0 : index
    %262 = memref.load %arg4[%c5_111, %c0_112] : memref<6x4xf32, #tpu.memory_space<smem>>
    %263 = vector.broadcast %262 : f32 to vector<1x128xf32>
    %264 = arith.mulf %263, %242 : vector<1x128xf32>
    %265 = arith.addf %261, %264 : vector<1x128xf32>
    %c0_113 = arith.constant 0 : index
    %266 = memref.load %arg5[%c0_113] : memref<4xf32, #tpu.memory_space<smem>>
    %267 = vector.broadcast %266 : f32 to vector<1x128xf32>
    %268 = arith.addf %265, %267 : vector<1x128xf32>
    %269 = arith.negf %268 : vector<1x128xf32>
    %270 = math.exp %269 : vector<1x128xf32>
    %cst_114 = arith.constant 1.000000e+00 : f32
    %271 = vector.broadcast %cst_114 : f32 to vector<1x128xf32>
    %272 = arith.addf %271, %270 : vector<1x128xf32>
    %273 = arith.divf %271, %272 : vector<1x128xf32>
    %c0_115 = arith.constant 0 : index
    %c1_116 = arith.constant 1 : index
    %274 = memref.load %arg4[%c0_115, %c1_116] : memref<6x4xf32, #tpu.memory_space<smem>>
    %275 = vector.broadcast %274 : f32 to vector<1x128xf32>
    %276 = arith.mulf %275, %47 : vector<1x128xf32>
    %c1_117 = arith.constant 1 : index
    %c1_118 = arith.constant 1 : index
    %277 = memref.load %arg4[%c1_117, %c1_118] : memref<6x4xf32, #tpu.memory_space<smem>>
    %278 = vector.broadcast %277 : f32 to vector<1x128xf32>
    %279 = arith.mulf %278, %86 : vector<1x128xf32>
    %280 = arith.addf %276, %279 : vector<1x128xf32>
    %c2_119 = arith.constant 2 : index
    %c1_120 = arith.constant 1 : index
    %281 = memref.load %arg4[%c2_119, %c1_120] : memref<6x4xf32, #tpu.memory_space<smem>>
    %282 = vector.broadcast %281 : f32 to vector<1x128xf32>
    %283 = arith.mulf %282, %125 : vector<1x128xf32>
    %284 = arith.addf %280, %283 : vector<1x128xf32>
    %c3_121 = arith.constant 3 : index
    %c1_122 = arith.constant 1 : index
    %285 = memref.load %arg4[%c3_121, %c1_122] : memref<6x4xf32, #tpu.memory_space<smem>>
    %286 = vector.broadcast %285 : f32 to vector<1x128xf32>
    %287 = arith.mulf %286, %164 : vector<1x128xf32>
    %288 = arith.addf %284, %287 : vector<1x128xf32>
    %c4_123 = arith.constant 4 : index
    %c1_124 = arith.constant 1 : index
    %289 = memref.load %arg4[%c4_123, %c1_124] : memref<6x4xf32, #tpu.memory_space<smem>>
    %290 = vector.broadcast %289 : f32 to vector<1x128xf32>
    %291 = arith.mulf %290, %203 : vector<1x128xf32>
    %292 = arith.addf %288, %291 : vector<1x128xf32>
    %c5_125 = arith.constant 5 : index
    %c1_126 = arith.constant 1 : index
    %293 = memref.load %arg4[%c5_125, %c1_126] : memref<6x4xf32, #tpu.memory_space<smem>>
    %294 = vector.broadcast %293 : f32 to vector<1x128xf32>
    %295 = arith.mulf %294, %242 : vector<1x128xf32>
    %296 = arith.addf %292, %295 : vector<1x128xf32>
    %c1_127 = arith.constant 1 : index
    %297 = memref.load %arg5[%c1_127] : memref<4xf32, #tpu.memory_space<smem>>
    %298 = vector.broadcast %297 : f32 to vector<1x128xf32>
    %299 = arith.addf %296, %298 : vector<1x128xf32>
    %300 = arith.negf %299 : vector<1x128xf32>
    %301 = math.exp %300 : vector<1x128xf32>
    %cst_128 = arith.constant 1.000000e+00 : f32
    %302 = vector.broadcast %cst_128 : f32 to vector<1x128xf32>
    %303 = arith.addf %302, %301 : vector<1x128xf32>
    %304 = arith.divf %302, %303 : vector<1x128xf32>
    %c0_129 = arith.constant 0 : index
    %c2_130 = arith.constant 2 : index
    %305 = memref.load %arg4[%c0_129, %c2_130] : memref<6x4xf32, #tpu.memory_space<smem>>
    %306 = vector.broadcast %305 : f32 to vector<1x128xf32>
    %307 = arith.mulf %306, %47 : vector<1x128xf32>
    %c1_131 = arith.constant 1 : index
    %c2_132 = arith.constant 2 : index
    %308 = memref.load %arg4[%c1_131, %c2_132] : memref<6x4xf32, #tpu.memory_space<smem>>
    %309 = vector.broadcast %308 : f32 to vector<1x128xf32>
    %310 = arith.mulf %309, %86 : vector<1x128xf32>
    %311 = arith.addf %307, %310 : vector<1x128xf32>
    %c2_133 = arith.constant 2 : index
    %c2_134 = arith.constant 2 : index
    %312 = memref.load %arg4[%c2_133, %c2_134] : memref<6x4xf32, #tpu.memory_space<smem>>
    %313 = vector.broadcast %312 : f32 to vector<1x128xf32>
    %314 = arith.mulf %313, %125 : vector<1x128xf32>
    %315 = arith.addf %311, %314 : vector<1x128xf32>
    %c3_135 = arith.constant 3 : index
    %c2_136 = arith.constant 2 : index
    %316 = memref.load %arg4[%c3_135, %c2_136] : memref<6x4xf32, #tpu.memory_space<smem>>
    %317 = vector.broadcast %316 : f32 to vector<1x128xf32>
    %318 = arith.mulf %317, %164 : vector<1x128xf32>
    %319 = arith.addf %315, %318 : vector<1x128xf32>
    %c4_137 = arith.constant 4 : index
    %c2_138 = arith.constant 2 : index
    %320 = memref.load %arg4[%c4_137, %c2_138] : memref<6x4xf32, #tpu.memory_space<smem>>
    %321 = vector.broadcast %320 : f32 to vector<1x128xf32>
    %322 = arith.mulf %321, %203 : vector<1x128xf32>
    %323 = arith.addf %319, %322 : vector<1x128xf32>
    %c5_139 = arith.constant 5 : index
    %c2_140 = arith.constant 2 : index
    %324 = memref.load %arg4[%c5_139, %c2_140] : memref<6x4xf32, #tpu.memory_space<smem>>
    %325 = vector.broadcast %324 : f32 to vector<1x128xf32>
    %326 = arith.mulf %325, %242 : vector<1x128xf32>
    %327 = arith.addf %323, %326 : vector<1x128xf32>
    %c2_141 = arith.constant 2 : index
    %328 = memref.load %arg5[%c2_141] : memref<4xf32, #tpu.memory_space<smem>>
    %329 = vector.broadcast %328 : f32 to vector<1x128xf32>
    %330 = arith.addf %327, %329 : vector<1x128xf32>
    %331 = arith.negf %330 : vector<1x128xf32>
    %332 = math.exp %331 : vector<1x128xf32>
    %cst_142 = arith.constant 1.000000e+00 : f32
    %333 = vector.broadcast %cst_142 : f32 to vector<1x128xf32>
    %334 = arith.addf %333, %332 : vector<1x128xf32>
    %335 = arith.divf %333, %334 : vector<1x128xf32>
    %c0_143 = arith.constant 0 : index
    %c3_144 = arith.constant 3 : index
    %336 = memref.load %arg4[%c0_143, %c3_144] : memref<6x4xf32, #tpu.memory_space<smem>>
    %337 = vector.broadcast %336 : f32 to vector<1x128xf32>
    %338 = arith.mulf %337, %47 : vector<1x128xf32>
    %c1_145 = arith.constant 1 : index
    %c3_146 = arith.constant 3 : index
    %339 = memref.load %arg4[%c1_145, %c3_146] : memref<6x4xf32, #tpu.memory_space<smem>>
    %340 = vector.broadcast %339 : f32 to vector<1x128xf32>
    %341 = arith.mulf %340, %86 : vector<1x128xf32>
    %342 = arith.addf %338, %341 : vector<1x128xf32>
    %c2_147 = arith.constant 2 : index
    %c3_148 = arith.constant 3 : index
    %343 = memref.load %arg4[%c2_147, %c3_148] : memref<6x4xf32, #tpu.memory_space<smem>>
    %344 = vector.broadcast %343 : f32 to vector<1x128xf32>
    %345 = arith.mulf %344, %125 : vector<1x128xf32>
    %346 = arith.addf %342, %345 : vector<1x128xf32>
    %c3_149 = arith.constant 3 : index
    %c3_150 = arith.constant 3 : index
    %347 = memref.load %arg4[%c3_149, %c3_150] : memref<6x4xf32, #tpu.memory_space<smem>>
    %348 = vector.broadcast %347 : f32 to vector<1x128xf32>
    %349 = arith.mulf %348, %164 : vector<1x128xf32>
    %350 = arith.addf %346, %349 : vector<1x128xf32>
    %c4_151 = arith.constant 4 : index
    %c3_152 = arith.constant 3 : index
    %351 = memref.load %arg4[%c4_151, %c3_152] : memref<6x4xf32, #tpu.memory_space<smem>>
    %352 = vector.broadcast %351 : f32 to vector<1x128xf32>
    %353 = arith.mulf %352, %203 : vector<1x128xf32>
    %354 = arith.addf %350, %353 : vector<1x128xf32>
    %c5_153 = arith.constant 5 : index
    %c3_154 = arith.constant 3 : index
    %355 = memref.load %arg4[%c5_153, %c3_154] : memref<6x4xf32, #tpu.memory_space<smem>>
    %356 = vector.broadcast %355 : f32 to vector<1x128xf32>
    %357 = arith.mulf %356, %242 : vector<1x128xf32>
    %358 = arith.addf %354, %357 : vector<1x128xf32>
    %c3_155 = arith.constant 3 : index
    %359 = memref.load %arg5[%c3_155] : memref<4xf32, #tpu.memory_space<smem>>
    %360 = vector.broadcast %359 : f32 to vector<1x128xf32>
    %361 = arith.addf %358, %360 : vector<1x128xf32>
    %362 = arith.negf %361 : vector<1x128xf32>
    %363 = math.exp %362 : vector<1x128xf32>
    %cst_156 = arith.constant 1.000000e+00 : f32
    %364 = vector.broadcast %cst_156 : f32 to vector<1x128xf32>
    %365 = arith.addf %364, %363 : vector<1x128xf32>
    %366 = arith.divf %364, %365 : vector<1x128xf32>
    %c0_157 = arith.constant 0 : index
    %c0_158 = arith.constant 0 : index
    %367 = memref.load %arg6[%c0_157, %c0_158] : memref<4x1xf32, #tpu.memory_space<smem>>
    %368 = vector.broadcast %367 : f32 to vector<1x128xf32>
    %369 = arith.mulf %368, %273 : vector<1x128xf32>
    %c1_159 = arith.constant 1 : index
    %c0_160 = arith.constant 0 : index
    %370 = memref.load %arg6[%c1_159, %c0_160] : memref<4x1xf32, #tpu.memory_space<smem>>
    %371 = vector.broadcast %370 : f32 to vector<1x128xf32>
    %372 = arith.mulf %371, %304 : vector<1x128xf32>
    %373 = arith.addf %369, %372 : vector<1x128xf32>
    %c2_161 = arith.constant 2 : index
    %c0_162 = arith.constant 0 : index
    %374 = memref.load %arg6[%c2_161, %c0_162] : memref<4x1xf32, #tpu.memory_space<smem>>
    %375 = vector.broadcast %374 : f32 to vector<1x128xf32>
    %376 = arith.mulf %375, %335 : vector<1x128xf32>
    %377 = arith.addf %373, %376 : vector<1x128xf32>
    %c3_163 = arith.constant 3 : index
    %c0_164 = arith.constant 0 : index
    %378 = memref.load %arg6[%c3_163, %c0_164] : memref<4x1xf32, #tpu.memory_space<smem>>
    %379 = vector.broadcast %378 : f32 to vector<1x128xf32>
    %380 = arith.mulf %379, %366 : vector<1x128xf32>
    %381 = arith.addf %377, %380 : vector<1x128xf32>
    %c0_165 = arith.constant 0 : index
    %382 = memref.load %arg7[%c0_165] : memref<1xf32, #tpu.memory_space<smem>>
    %383 = vector.broadcast %382 : f32 to vector<1x128xf32>
    %384 = arith.addf %381, %383 : vector<1x128xf32>
    %385 = arith.negf %384 : vector<1x128xf32>
    %386 = math.exp %385 : vector<1x128xf32>
    %cst_166 = arith.constant 1.000000e+00 : f32
    %387 = vector.broadcast %cst_166 : f32 to vector<1x128xf32>
    %388 = arith.addf %387, %386 : vector<1x128xf32>
    %389 = arith.divf %387, %388 : vector<1x128xf32>
    %c0_167 = arith.constant 0 : index
    %c0_168 = arith.constant 0 : index
    %390 = vector.load %arg8[%c0_167, %c0_168] : memref<1x128xf32, #tpu.memory_space<vmem>>, vector<1x128xf32>
    tpu.vector_store %arg8[%c0_167, %c0_168], %389 {strides = array<i32>} : memref<1x128xf32, #tpu.memory_space<vmem>>, vector<1x128xf32>,
    return
  }
  func.func @transform_0(%arg0: i32) -> (i32, i32) {
    %c0_i32 = arith.constant 0 : i32
    %c0_i32_0 = arith.constant 0 : i32
    return %c0_i32, %arg0 : i32, i32
  }
  func.func @transform_1(%arg0: i32) -> (i32, i32) {
    %c0_i32 = arith.constant 0 : i32
    %c0_i32_0 = arith.constant 0 : i32
    %c0_i32_1 = arith.constant 0 : i32
    return %c0_i32, %c0_i32_0 : i32, i32
  }
  func.func @transform_2(%arg0: i32) -> i32 {
    %c0_i32 = arith.constant 0 : i32
    %c0_i32_0 = arith.constant 0 : i32
    return %c0_i32 : i32
  }
  func.func @transform_3(%arg0: i32) -> (i32, i32) {
    %c0_i32 = arith.constant 0 : i32
    %c0_i32_0 = arith.constant 0 : i32
    %c0_i32_1 = arith.constant 0 : i32
    return %c0_i32, %c0_i32_0 : i32, i32
  }
  func.func @transform_4(%arg0: i32) -> i32 {
    %c0_i32 = arith.constant 0 : i32
    %c0_i32_0 = arith.constant 0 : i32
    return %c0_i32 : i32
  }
  func.func @transform_5(%arg0: i32) -> (i32, i32) {
    %c0_i32 = arith.constant 0 : i32
    %c0_i32_0 = arith.constant 0 : i32
    %c0_i32_1 = arith.constant 0 : i32
    return %c0_i32, %c0_i32_0 : i32, i32
  }
  func.func @transform_6(%arg0: i32) -> i32 {
    %c0_i32 = arith.constant 0 : i32
    %c0_i32_0 = arith.constant 0 : i32
    return %c0_i32 : i32
  }
  func.func @transform_7(%arg0: i32) -> (i32, i32) {
    %c0_i32 = arith.constant 0 : i32
    %c0_i32_0 = arith.constant 0 : i32
    return %c0_i32, %arg0 : i32, i32
  }
}

</mosaic_0001>

<llo_original>
// kernel: mlp_forward.1
$region0: #{mlp_forward.1}
  #allocation0 [shape = 'u32[]', space=smem, size = 0x4, offset = 0x4, fixed_abs, tag = 'smem constant byte address 0x4 - core index']
  #allocation1 [shape = 'u32[144,128]{1,0:T(1,128)}', space=vmem, size = 0x12000, scoped, tag = 'internal scratch']
  #allocation2 [shape = 'f32[1]{0:T(128)S(6)}', space=smem, size = 0x200, scoped, tag = 'scoped memory for mlp_forward.1']
  %s0 = inlined_call_operand.vmem [shape: f32[8,128], index: 0, kind: input, shape index: {}]
  %s1 = inlined_call_operand.vmem [shape: f32[8,6], index: 1, kind: input, shape index: {}]
  %s2 = inlined_call_operand.vmem [shape: f32[6], index: 2, kind: input, shape index: {}]
  %s3 = inlined_call_operand.vmem [shape: f32[6,4], index: 3, kind: input, shape index: {}]
  %s4 = inlined_call_operand.vmem [shape: f32[4], index: 4, kind: input, shape index: {}]
  %s5 = inlined_call_operand.vmem [shape: f32[4,1], index: 5, kind: input, shape index: {}]
  %s6 = inlined_call_operand.<no memory space> [shape: f32[1], index: 6, kind: input, shape index: {}]
  %s7 = inlined_call_operand.vmem [shape: f32[1,128], index: 7, kind: output, shape index: {}]
  %s8 = sld [smem:[#allocation0]]
  $region58: #{mlp_forward.1} parent=0
    _
  %s10 = ssub.s32 1, %s8
  %s11 = scalar_select 0, %s10, %s8
  %12 = sst [smem:[#allocation2]] %s6
  $region1: #{mlp_forward.1} parent=0
    #allocation3 [shape = 'u8[4096]{0}', space=smem, size = 0x1000, scoped, tag = 'input window, operand 1, single buffered']
    #allocation4 [shape = 's32[1]{0}', space=sflag, size = 0x4, scoped, tag = 'scoped memory for mlp_forward.1']
    #allocation5 [shape = 'u8[512]{0}', space=smem, size = 0x200, scoped, tag = 'input window, operand 2, single buffered']
    #allocation6 [shape = 's32[1]{0}', space=sflag, size = 0x4, scoped, tag = 'scoped memory for mlp_forward.1']
    #allocation7 [shape = 'u8[4096]{0}', space=smem, size = 0x1000, scoped, tag = 'input window, operand 3, single buffered']
    #allocation8 [shape = 'u8[512]{0}', space=smem, size = 0x200, scoped, tag = 'input window, operand 4, single buffered']
    #allocation9 [shape = 's32[1]{0}', space=sflag, size = 0x4, scoped, tag = 'scoped memory for mlp_forward.1']
    #allocation10 [shape = 'u8[2048]{0}', space=smem, size = 0x800, scoped, tag = 'input window, operand 5, single buffered']
    %13 = vsyncpa [#allocation4], 0
    %14 = vsyncpa [#allocation6], 0
    %15 = vsyncpa [#allocation9], 0
    // Predicated region
    $region2: #{mlp_forward.1} parent=1 // pred_check
      _
    $region3: #{mlp_forward.1} parent=1 // pred_check_branch
      %17 = sbr.rel (0) target = $region5
    $region4: #{mlp_forward.1} parent=1 // pred_region
      _
    $region5: #{mlp_forward.1} parent=1 // pred_fallthru
      _
    // Predicated region
    $region6: #{mlp_forward.1} parent=1 // pred_check
      _
    $region7: #{mlp_forward.1} parent=1 // pred_check_branch
      %19 = sbr.rel (0) target = $region9
    $region8: #{mlp_forward.1} parent=1 // pred_region
      %s21 = ssub.s32 128, 128
      %22 = vsyncadd [#allocation4], %s21
      %s24 = sshll.u32 %s1, 4
      %s25 = int_to_ptr.vmem [resolvable:$true] %s24
      %27 = dma.vmem_to_smem %s25, 128, [#allocation3], [#allocation4]
    $region9: #{mlp_forward.1} parent=1 // pred_fallthru
      _
    // Predicated region
    $region10: #{mlp_forward.1} parent=1 // pred_check
      _
    $region11: #{mlp_forward.1} parent=1 // pred_check_branch
      %29 = sbr.rel (0) target = $region13
    $region12: #{mlp_forward.1} parent=1 // pred_region
      %s31 = ssub.s32 16, 16
      %32 = vsyncadd [#allocation6], %s31
      %s34 = sshll.u32 %s2, 4
      %s35 = int_to_ptr.vmem [resolvable:$true] %s34
      %37 = dma.vmem_to_smem %s35, 16, [#allocation5], [#allocation6]
    $region13: #{mlp_forward.1} parent=1 // pred_fallthru
      _
    // Predicated region
    $region14: #{mlp_forward.1} parent=1 // pred_check
      _
    $region15: #{mlp_forward.1} parent=1 // pred_check_branch
      %39 = sbr.rel (0) target = $region17
    $region16: #{mlp_forward.1} parent=1 // pred_region
      %s41 = ssub.s32 128, 128
      %42 = vsyncadd [#allocation6], %s41
      %s44 = sshll.u32 %s3, 4
      %s45 = int_to_ptr.vmem [resolvable:$true] %s44
      %47 = dma.vmem_to_smem %s45, 128, [#allocation7], [#allocation6]
    $region17: #{mlp_forward.1} parent=1 // pred_fallthru
      _
    // Predicated region
    $region18: #{mlp_forward.1} parent=1 // pred_check
      _
    $region19: #{mlp_forward.1} parent=1 // pred_check_branch
      %49 = sbr.rel (0) target = $region21
    $region20: #{mlp_forward.1} parent=1 // pred_region
      %s51 = ssub.s32 16, 16
      %52 = vsyncadd [#allocation9], %s51
      %s54 = sshll.u32 %s4, 4
      %s55 = int_to_ptr.vmem [resolvable:$true] %s54
      %57 = dma.vmem_to_smem %s55, 16, [#allocation8], [#allocation9]
    $region21: #{mlp_forward.1} parent=1 // pred_fallthru
      _
    // Predicated region
    $region22: #{mlp_forward.1} parent=1 // pred_check
      _
    $region23: #{mlp_forward.1} parent=1 // pred_check_branch
      %59 = sbr.rel (0) target = $region25
    $region24: #{mlp_forward.1} parent=1 // pred_region
      %s61 = ssub.s32 64, 64
      %62 = vsyncadd [#allocation9], %s61
      %s64 = sshll.u32 %s5, 4
      %s65 = int_to_ptr.vmem [resolvable:$true] %s64
      %67 = dma.vmem_to_smem %s65, 64, [#allocation10], [#allocation9]
    $region25: #{mlp_forward.1} parent=1 // pred_fallthru
      _
    // Predicated region
    $region26: #{mlp_forward.1} parent=1 // pred_check
      _
    $region27: #{mlp_forward.1} parent=1 // pred_check_branch
      %69 = sbr.rel (0) target = $region29
    $region28: #{mlp_forward.1} parent=1 // pred_region
      _
    $region29: #{mlp_forward.1} parent=1 // pred_fallthru
      _
    // Predicated region
    $region30: #{mlp_forward.1} parent=1 // pred_check
      _
    $region31: #{mlp_forward.1} parent=1 // pred_check_branch
      %71 = sbr.rel (0) target = $region33
    $region32: #{mlp_forward.1} parent=1 // pred_region
      %72 = dma.done [#allocation4], 128
    $region33: #{mlp_forward.1} parent=1 // pred_fallthru
      _
    // Predicated region
    $region34: #{mlp_forward.1} parent=1 // pred_check
      _
    $region35: #{mlp_forward.1} parent=1 // pred_check_branch
      %74 = sbr.rel (0) target = $region37
    $region36: #{mlp_forward.1} parent=1 // pred_region
      %75 = dma.done [#allocation6], 16
    $region37: #{mlp_forward.1} parent=1 // pred_fallthru
      _
    // Predicated region
    $region38: #{mlp_forward.1} parent=1 // pred_check
      _
    $region39: #{mlp_forward.1} parent=1 // pred_check_branch
      %77 = sbr.rel (0) target = $region41
    $region40: #{mlp_forward.1} parent=1 // pred_region
      %78 = dma.done [#allocation6], 128
    $region41: #{mlp_forward.1} parent=1 // pred_fallthru
      _
    // Predicated region
    $region42: #{mlp_forward.1} parent=1 // pred_check
      _
    $region43: #{mlp_forward.1} parent=1 // pred_check_branch
      %80 = sbr.rel (0) target = $region45
    $region44: #{mlp_forward.1} parent=1 // pred_region
      %81 = dma.done [#allocation9], 16
    $region45: #{mlp_forward.1} parent=1 // pred_fallthru
      _
    // Predicated region
    $region46: #{mlp_forward.1} parent=1 // pred_check
      _
    $region47: #{mlp_forward.1} parent=1 // pred_check_branch
      %83 = sbr.rel (0) target = $region49
    $region48: #{mlp_forward.1} parent=1 // pred_region
      %84 = dma.done [#allocation9], 64
    $region49: #{mlp_forward.1} parent=1 // pred_fallthru
      _
    %85 = sfence
    %v86 = vld [vmem:[%s0] sm:$0xff]
    %s87 = sld [smem:[#allocation3]]
    %v88 = vstv %s87
    %v89 = vmul.f32 %v88, %v86
    %s90 = sld [smem:[#allocation3 + $0x80]]
    %v91 = vstv %s90
    %v92 = vmul.f32 %v91, %v86
    %v94 = vrot.slane %v92, 1
    %v96 = vadd.f32 %v89, %v94
    %s97 = sld [smem:[#allocation3 + $0x100]]
    %v98 = vstv %s97
    %v99 = vmul.f32 %v98, %v86
    %v101 = vrot.slane %v99, 2
    %v103 = vadd.f32 %v96, %v101
    %s104 = sld [smem:[#allocation3 + $0x180]]
    %v105 = vstv %s104
    %v106 = vmul.f32 %v105, %v86
    %v108 = vrot.slane %v106, 3
    %v110 = vadd.f32 %v103, %v108
    %s111 = sld [smem:[#allocation3 + $0x200]]
    %v112 = vstv %s111
    %v113 = vmul.f32 %v112, %v86
    %v115 = vrot.slane %v113, 4
    %v117 = vadd.f32 %v110, %v115
    %s118 = sld [smem:[#allocation3 + $0x280]]
    %v119 = vstv %s118
    %v120 = vmul.f32 %v119, %v86
    %v122 = vrot.slane %v120, 5
    %v124 = vadd.f32 %v117, %v122
    %s125 = sld [smem:[#allocation3 + $0x300]]
    %v126 = vstv %s125
    %v127 = vmul.f32 %v126, %v86
    %v129 = vrot.slane %v127, 6
    %v131 = vadd.f32 %v124, %v129
    %s132 = sld [smem:[#allocation3 + $0x380]]
    %v133 = vstv %s132
    %v134 = vmul.f32 %v133, %v86
    %v136 = vrot.slane %v134, 7
    %v138 = vadd.f32 %v131, %v136
    %s139 = sld [smem:[#allocation5]]
    %v140 = vstv %s139
    %v141 = vadd.f32 %v138, %v140
    %v142 = vxor.u32 %v141, 2147483648
    %v143 = vmul.f32 %v142, 1.442695
    %v144 = vpow.pop %v143
    %v145 = vadd.f32 %v144, 1.0
    %v146 = vrcp.pop %v145
    %v147 = vmul.f32 1.0, %v146
    %s148 = sld [smem:[#allocation3 + $0x1]]
    %v149 = vstv %s148
    %v150 = vmul.f32 %v149, %v86
    %s151 = sld [smem:[#allocation3 + $0x81]]
    %v152 = vstv %s151
    %v153 = vmul.f32 %v152, %v86
    %v155 = vrot.slane %v153, 1
    %v157 = vadd.f32 %v150, %v155
    %s158 = sld [smem:[#allocation3 + $0x101]]
    %v159 = vstv %s158
    %v160 = vmul.f32 %v159, %v86
    %v162 = vrot.slane %v160, 2
    %v164 = vadd.f32 %v157, %v162
    %s165 = sld [smem:[#allocation3 + $0x181]]
    %v166 = vstv %s165
    %v167 = vmul.f32 %v166, %v86
    %v169 = vrot.slane %v167, 3
    %v171 = vadd.f32 %v164, %v169
    %s172 = sld [smem:[#allocation3 + $0x201]]
    %v173 = vstv %s172
    %v174 = vmul.f32 %v173, %v86
    %v176 = vrot.slane %v174, 4
    %v178 = vadd.f32 %v171, %v176
    %s179 = sld [smem:[#allocation3 + $0x281]]
    %v180 = vstv %s179
    %v181 = vmul.f32 %v180, %v86
    %v183 = vrot.slane %v181, 5
    %v185 = vadd.f32 %v178, %v183
    %s186 = sld [smem:[#allocation3 + $0x301]]
    %v187 = vstv %s186
    %v188 = vmul.f32 %v187, %v86
    %v190 = vrot.slane %v188, 6
    %v192 = vadd.f32 %v185, %v190
    %s193 = sld [smem:[#allocation3 + $0x381]]
    %v194 = vstv %s193
    %v195 = vmul.f32 %v194, %v86
    %v197 = vrot.slane %v195, 7
    %v199 = vadd.f32 %v192, %v197
    %s200 = sld [smem:[#allocation5 + $0x1]]
    %v201 = vstv %s200
    %v202 = vadd.f32 %v199, %v201
    %v203 = vxor.u32 %v202, 2147483648
    %v204 = vmul.f32 %v203, 1.442695
    %v205 = vpow.pop %v204
    %v206 = vadd.f32 %v205, 1.0
    %v207 = vrcp.pop %v206
    %v208 = vmul.f32 1.0, %v207
    %s209 = sld [smem:[#allocation3 + $0x2]]
    %v210 = vstv %s209
    %v211 = vmul.f32 %v210, %v86
    %s212 = sld [smem:[#allocation3 + $0x82]]
    %v213 = vstv %s212
    %v214 = vmul.f32 %v213, %v86
    %v216 = vrot.slane %v214, 1
    %v218 = vadd.f32 %v211, %v216
    %s219 = sld [smem:[#allocation3 + $0x102]]
    %v220 = vstv %s219
    %v221 = vmul.f32 %v220, %v86
    %v223 = vrot.slane %v221, 2
    %v225 = vadd.f32 %v218, %v223
    %s226 = sld [smem:[#allocation3 + $0x182]]
    %v227 = vstv %s226
    %v228 = vmul.f32 %v227, %v86
    %v230 = vrot.slane %v228, 3
    %v232 = vadd.f32 %v225, %v230
    %s233 = sld [smem:[#allocation3 + $0x202]]
    %v234 = vstv %s233
    %v235 = vmul.f32 %v234, %v86
    %v237 = vrot.slane %v235, 4
    %v239 = vadd.f32 %v232, %v237
    %s240 = sld [smem:[#allocation3 + $0x282]]
    %v241 = vstv %s240
    %v242 = vmul.f32 %v241, %v86
    %v244 = vrot.slane %v242, 5
    %v246 = vadd.f32 %v239, %v244
    %s247 = sld [smem:[#allocation3 + $0x302]]
    %v248 = vstv %s247
    %v249 = vmul.f32 %v248, %v86
    %v251 = vrot.slane %v249, 6
    %v253 = vadd.f32 %v246, %v251
    %s254 = sld [smem:[#allocation3 + $0x382]]
    %v255 = vstv %s254
    %v256 = vmul.f32 %v255, %v86
    %v258 = vrot.slane %v256, 7
    %v260 = vadd.f32 %v253, %v258
    %s261 = sld [smem:[#allocation5 + $0x2]]
    %v262 = vstv %s261
    %v263 = vadd.f32 %v260, %v262
    %v264 = vxor.u32 %v263, 2147483648
    %v265 = vmul.f32 %v264, 1.442695
    %v266 = vpow.pop %v265
    %v267 = vadd.f32 %v266, 1.0
    %v268 = vrcp.pop %v267
    %v269 = vmul.f32 1.0, %v268
    %s270 = sld [smem:[#allocation3 + $0x3]]
    %v271 = vstv %s270
    %v272 = vmul.f32 %v271, %v86
    %s273 = sld [smem:[#allocation3 + $0x83]]
    %v274 = vstv %s273
    %v275 = vmul.f32 %v274, %v86
    %v277 = vrot.slane %v275, 1
    %v279 = vadd.f32 %v272, %v277
    %s280 = sld [smem:[#allocation3 + $0x103]]
    %v281 = vstv %s280
    %v282 = vmul.f32 %v281, %v86
    %v284 = vrot.slane %v282, 2
    %v286 = vadd.f32 %v279, %v284
    %s287 = sld [smem:[#allocation3 + $0x183]]
    %v288 = vstv %s287
    %v289 = vmul.f32 %v288, %v86
    %v291 = vrot.slane %v289, 3
    %v293 = vadd.f32 %v286, %v291
    %s294 = sld [smem:[#allocation3 + $0x203]]
    %v295 = vstv %s294
    %v296 = vmul.f32 %v295, %v86
    %v298 = vrot.slane %v296, 4
    %v300 = vadd.f32 %v293, %v298
    %s301 = sld [smem:[#allocation3 + $0x283]]
    %v302 = vstv %s301
    %v303 = vmul.f32 %v302, %v86
    %v305 = vrot.slane %v303, 5
    %v307 = vadd.f32 %v300, %v305
    %s308 = sld [smem:[#allocation3 + $0x303]]
    %v309 = vstv %s308
    %v310 = vmul.f32 %v309, %v86
    %v312 = vrot.slane %v310, 6
    %v314 = vadd.f32 %v307, %v312
    %s315 = sld [smem:[#allocation3 + $0x383]]
    %v316 = vstv %s315
    %v317 = vmul.f32 %v316, %v86
    %v319 = vrot.slane %v317, 7
    %v321 = vadd.f32 %v314, %v319
    %s322 = sld [smem:[#allocation5 + $0x3]]
    %v323 = vstv %s322
    %v324 = vadd.f32 %v321, %v323
    %v325 = vxor.u32 %v324, 2147483648
    %v326 = vmul.f32 %v325, 1.442695
    %v327 = vpow.pop %v326
    %v328 = vadd.f32 %v327, 1.0
    %v329 = vrcp.pop %v328
    %v330 = vmul.f32 1.0, %v329
    %s331 = sld [smem:[#allocation3 + $0x4]]
    %v332 = vstv %s331
    %v333 = vmul.f32 %v332, %v86
    %s334 = sld [smem:[#allocation3 + $0x84]]
    %v335 = vstv %s334
    %v336 = vmul.f32 %v335, %v86
    %v338 = vrot.slane %v336, 1
    %v340 = vadd.f32 %v333, %v338
    %s341 = sld [smem:[#allocation3 + $0x104]]
    %v342 = vstv %s341
    %v343 = vmul.f32 %v342, %v86
    %v345 = vrot.slane %v343, 2
    %v347 = vadd.f32 %v340, %v345
    %s348 = sld [smem:[#allocation3 + $0x184]]
    %v349 = vstv %s348
    %v350 = vmul.f32 %v349, %v86
    %v352 = vrot.slane %v350, 3
    %v354 = vadd.f32 %v347, %v352
    %s355 = sld [smem:[#allocation3 + $0x204]]
    %v356 = vstv %s355
    %v357 = vmul.f32 %v356, %v86
    %v359 = vrot.slane %v357, 4
    %v361 = vadd.f32 %v354, %v359
    %s362 = sld [smem:[#allocation3 + $0x284]]
    %v363 = vstv %s362
    %v364 = vmul.f32 %v363, %v86
    %v366 = vrot.slane %v364, 5
    %v368 = vadd.f32 %v361, %v366
    %s369 = sld [smem:[#allocation3 + $0x304]]
    %v370 = vstv %s369
    %v371 = vmul.f32 %v370, %v86
    %v373 = vrot.slane %v371, 6
    %v375 = vadd.f32 %v368, %v373
    %s376 = sld [smem:[#allocation3 + $0x384]]
    %v377 = vstv %s376
    %v378 = vmul.f32 %v377, %v86
    %v380 = vrot.slane %v378, 7
    %v382 = vadd.f32 %v375, %v380
    %s383 = sld [smem:[#allocation5 + $0x4]]
    %v384 = vstv %s383
    %v385 = vadd.f32 %v382, %v384
    %v386 = vxor.u32 %v385, 2147483648
    %v387 = vmul.f32 %v386, 1.442695
    %v388 = vpow.pop %v387
    %v389 = vadd.f32 %v388, 1.0
    %v390 = vrcp.pop %v389
    %v391 = vmul.f32 1.0, %v390
    %s392 = sld [smem:[#allocation3 + $0x5]]
    %v393 = vstv %s392
    %v394 = vmul.f32 %v393, %v86
    %s395 = sld [smem:[#allocation3 + $0x85]]
    %v396 = vstv %s395
    %v397 = vmul.f32 %v396, %v86
    %v399 = vrot.slane %v397, 1
    %v401 = vadd.f32 %v394, %v399
    %s402 = sld [smem:[#allocation3 + $0x105]]
    %v403 = vstv %s402
    %v404 = vmul.f32 %v403, %v86
    %v406 = vrot.slane %v404, 2
    %v408 = vadd.f32 %v401, %v406
    %s409 = sld [smem:[#allocation3 + $0x185]]
    %v410 = vstv %s409
    %v411 = vmul.f32 %v410, %v86
    %v413 = vrot.slane %v411, 3
    %v415 = vadd.f32 %v408, %v413
    %s416 = sld [smem:[#allocation3 + $0x205]]
    %v417 = vstv %s416
    %v418 = vmul.f32 %v417, %v86
    %v420 = vrot.slane %v418, 4
    %v422 = vadd.f32 %v415, %v420
    %s423 = sld [smem:[#allocation3 + $0x285]]
    %v424 = vstv %s423
    %v425 = vmul.f32 %v424, %v86
    %v427 = vrot.slane %v425, 5
    %v429 = vadd.f32 %v422, %v427
    %s430 = sld [smem:[#allocation3 + $0x305]]
    %v431 = vstv %s430
    %v432 = vmul.f32 %v431, %v86
    %v434 = vrot.slane %v432, 6
    %v436 = vadd.f32 %v429, %v434
    %s437 = sld [smem:[#allocation3 + $0x385]]
    %v438 = vstv %s437
    %v439 = vmul.f32 %v438, %v86
    %v441 = vrot.slane %v439, 7
    %v443 = vadd.f32 %v436, %v441
    %s444 = sld [smem:[#allocation5 + $0x5]]
    %v445 = vstv %s444
    %v446 = vadd.f32 %v443, %v445
    %v447 = vxor.u32 %v446, 2147483648
    %v448 = vmul.f32 %v447, 1.442695
    %v449 = vpow.pop %v448
    %v450 = vadd.f32 %v449, 1.0
    %v451 = vrcp.pop %v450
    %v452 = vmul.f32 1.0, %v451
    %s453 = sld [smem:[#allocation7]]
    %v454 = vstv %s453
    %v455 = vmul.f32 %v454, %v147
    %s456 = sld [smem:[#allocation7 + $0x80]]
    %v457 = vstv %s456
    %v458 = vmul.f32 %v457, %v208
    %v459 = vadd.f32 %v455, %v458
    %s460 = sld [smem:[#allocation7 + $0x100]]
    %v461 = vstv %s460
    %v462 = vmul.f32 %v461, %v269
    %v463 = vadd.f32 %v459, %v462
    %s464 = sld [smem:[#allocation7 + $0x180]]
    %v465 = vstv %s464
    %v466 = vmul.f32 %v465, %v330
    %v467 = vadd.f32 %v463, %v466
    %s468 = sld [smem:[#allocation7 + $0x200]]
    %v469 = vstv %s468
    %v470 = vmul.f32 %v469, %v391
    %v471 = vadd.f32 %v467, %v470
    %s472 = sld [smem:[#allocation7 + $0x280]]
    %v473 = vstv %s472
    %v474 = vmul.f32 %v473, %v452
    %v475 = vadd.f32 %v471, %v474
    %s476 = sld [smem:[#allocation8]]
    %v477 = vstv %s476
    %v478 = vadd.f32 %v475, %v477
    %v479 = vxor.u32 %v478, 2147483648
    %v480 = vmul.f32 %v479, 1.442695
    %v481 = vpow.pop %v480
    %v482 = vadd.f32 %v481, 1.0
    %v483 = vrcp.pop %v482
    %v484 = vmul.f32 1.0, %v483
    %s485 = sld [smem:[#allocation7 + $0x1]]
    %v486 = vstv %s485
    %v487 = vmul.f32 %v486, %v147
    %s488 = sld [smem:[#allocation7 + $0x81]]
    %v489 = vstv %s488
    %v490 = vmul.f32 %v489, %v208
    %v491 = vadd.f32 %v487, %v490
    %s492 = sld [smem:[#allocation7 + $0x101]]
    %v493 = vstv %s492
    %v494 = vmul.f32 %v493, %v269
    %v495 = vadd.f32 %v491, %v494
    %s496 = sld [smem:[#allocation7 + $0x181]]
    %v497 = vstv %s496
    %v498 = vmul.f32 %v497, %v330
    %v499 = vadd.f32 %v495, %v498
    %s500 = sld [smem:[#allocation7 + $0x201]]
    %v501 = vstv %s500
    %v502 = vmul.f32 %v501, %v391
    %v503 = vadd.f32 %v499, %v502
    %s504 = sld [smem:[#allocation7 + $0x281]]
    %v505 = vstv %s504
    %v506 = vmul.f32 %v505, %v452
    %v507 = vadd.f32 %v503, %v506
    %s508 = sld [smem:[#allocation8 + $0x1]]
    %v509 = vstv %s508
    %v510 = vadd.f32 %v507, %v509
    %v511 = vxor.u32 %v510, 2147483648
    %v512 = vmul.f32 %v511, 1.442695
    %v513 = vpow.pop %v512
    %v514 = vadd.f32 %v513, 1.0
    %v515 = vrcp.pop %v514
    %v516 = vmul.f32 1.0, %v515
    %s517 = sld [smem:[#allocation7 + $0x2]]
    %v518 = vstv %s517
    %v519 = vmul.f32 %v518, %v147
    %s520 = sld [smem:[#allocation7 + $0x82]]
    %v521 = vstv %s520
    %v522 = vmul.f32 %v521, %v208
    %v523 = vadd.f32 %v519, %v522
    %s524 = sld [smem:[#allocation7 + $0x102]]
    %v525 = vstv %s524
    %v526 = vmul.f32 %v525, %v269
    %v527 = vadd.f32 %v523, %v526
    %s528 = sld [smem:[#allocation7 + $0x182]]
    %v529 = vstv %s528
    %v530 = vmul.f32 %v529, %v330
    %v531 = vadd.f32 %v527, %v530
    %s532 = sld [smem:[#allocation7 + $0x202]]
    %v533 = vstv %s532
    %v534 = vmul.f32 %v533, %v391
    %v535 = vadd.f32 %v531, %v534
    %s536 = sld [smem:[#allocation7 + $0x282]]
    %v537 = vstv %s536
    %v538 = vmul.f32 %v537, %v452
    %v539 = vadd.f32 %v535, %v538
    %s540 = sld [smem:[#allocation8 + $0x2]]
    %v541 = vstv %s540
    %v542 = vadd.f32 %v539, %v541
    %v543 = vxor.u32 %v542, 2147483648
    %v544 = vmul.f32 %v543, 1.442695
    %v545 = vpow.pop %v544
    %v546 = vadd.f32 %v545, 1.0
    %v547 = vrcp.pop %v546
    %v548 = vmul.f32 1.0, %v547
    %s549 = sld [smem:[#allocation7 + $0x3]]
    %v550 = vstv %s549
    %v551 = vmul.f32 %v550, %v147
    %s552 = sld [smem:[#allocation7 + $0x83]]
    %v553 = vstv %s552
    %v554 = vmul.f32 %v553, %v208
    %v555 = vadd.f32 %v551, %v554
    %s556 = sld [smem:[#allocation7 + $0x103]]
    %v557 = vstv %s556
    %v558 = vmul.f32 %v557, %v269
    %v559 = vadd.f32 %v555, %v558
    %s560 = sld [smem:[#allocation7 + $0x183]]
    %v561 = vstv %s560
    %v562 = vmul.f32 %v561, %v330
    %v563 = vadd.f32 %v559, %v562
    %s564 = sld [smem:[#allocation7 + $0x203]]
    %v565 = vstv %s564
    %v566 = vmul.f32 %v565, %v391
    %v567 = vadd.f32 %v563, %v566
    %s568 = sld [smem:[#allocation7 + $0x283]]
    %v569 = vstv %s568
    %v570 = vmul.f32 %v569, %v452
    %v571 = vadd.f32 %v567, %v570
    %s572 = sld [smem:[#allocation8 + $0x3]]
    %v573 = vstv %s572
    %v574 = vadd.f32 %v571, %v573
    %v575 = vxor.u32 %v574, 2147483648
    %v576 = vmul.f32 %v575, 1.442695
    %v577 = vpow.pop %v576
    %v578 = vadd.f32 %v577, 1.0
    %v579 = vrcp.pop %v578
    %v580 = vmul.f32 1.0, %v579
    %s581 = sld [smem:[#allocation10]]
    %v582 = vstv %s581
    %v583 = vmul.f32 %v582, %v484
    %s584 = sld [smem:[#allocation10 + $0x80]]
    %v585 = vstv %s584
    %v586 = vmul.f32 %v585, %v516
    %v587 = vadd.f32 %v583, %v586
    %s588 = sld [smem:[#allocation10 + $0x100]]
    %v589 = vstv %s588
    %v590 = vmul.f32 %v589, %v548
    %v591 = vadd.f32 %v587, %v590
    %s592 = sld [smem:[#allocation10 + $0x180]]
    %v593 = vstv %s592
    %v594 = vmul.f32 %v593, %v580
    %v595 = vadd.f32 %v591, %v594
    %s596 = sld [smem:[#allocation2]]
    %v597 = vstv %s596
    %v598 = vadd.f32 %v595, %v597
    %v599 = vxor.u32 %v598, 2147483648
    %v600 = vmul.f32 %v599, 1.442695
    %v601 = vpow.pop %v600
    %v602 = vadd.f32 %v601, 1.0
    %v603 = vrcp.pop %v602
    %v604 = vmul.f32 1.0, %v603
    %605 = vst [vmem:[%s7] sm:$0x1] %v604
    // Predicated region
    $region50: #{mlp_forward.1} parent=1 // pred_check
      _
    $region51: #{mlp_forward.1} parent=1 // pred_check_branch
      %607 = sbr.rel (0) target = $region53
    $region52: #{mlp_forward.1} parent=1 // pred_region
      _
    $region53: #{mlp_forward.1} parent=1 // pred_fallthru
      _
    // Predicated region
    $region54: #{mlp_forward.1} parent=1 // pred_check
      _
    $region55: #{mlp_forward.1} parent=1 // pred_check_branch
      %609 = sbr.rel (0) target = $region57
    $region56: #{mlp_forward.1} parent=1 // pred_region
      _
    $region57: #{mlp_forward.1} parent=1 // pred_fallthru
      _
    %610 = vsyncpa [#allocation4], 1
    %611 = vsyncpa [#allocation6], 1
    %612 = vsyncpa [#allocation9], 1

</llo_original>
